<compile_context>
chip_gen: v6e
topology: v6e:2x2x1
jax: 0.10.0
libtpu: 0.0.40
codegen_flags: <defaults>
</compile_context>

<pallas_src>
import functools

import jax
import jax.numpy as jnp
from jax.experimental import pallas as pl
from jax.experimental.pallas import tpu as pltpu


# ----------------------------------------------------------------------------
# Parameter-side quantization (module __init__ semantics; init-time host glue,
# intentionally NOT jit-traceable -- mirrors .item()/int(round()) in PyTorch).
# NOTE: the original forward() uses q_weight.float() WITHOUT subtracting the
# zero point -- we reproduce that behavior exactly.
# ----------------------------------------------------------------------------
def quantize_weight(w, num_bits=8):
    qmin, qmax = -128, 127
    min_val = float(jnp.min(w))
    max_val = float(jnp.max(w))
    scale = (max_val - min_val) / (qmax - qmin + 1e-08)
    zero_point = int(round(-min_val / scale))
    q = jnp.clip(jnp.round(w / scale) + zero_point, qmin, qmax).astype(jnp.int8)
    return q, scale, zero_point


def _pick_c_block(c):
    """Largest lane-dense channel block (multiple of 128) that divides C."""
    if c % 128 != 0:
        return c  # small / odd channel counts: one full block (still correct)
    for cb in (512, 384, 256, 128):
        if c % cb == 0:
            return cb
    return 128


# ----------------------------------------------------------------------------
# Pass 1: symmetric int8 activation quantization.
# x is (B, L, C) f32, x_scale is a (1,) f32 scalar living in SMEM.
# ----------------------------------------------------------------------------
def _quantize_act_kernel(scale_ref, x_ref, q_ref):
    s = scale_ref[0]  # global scale (computed outside -> correct under tiling)
    q_ref[...] = jnp.clip(jnp.round(x_ref[...] / s), -128.0, 127.0).astype(jnp.int8)


def quantize_activation_int8(x_blc, x_scale):
    B, L, C = x_blc.shape
    cb = _pick_c_block(C)
    grid = (B, C // cb)
    grid_spec = pltpu.PrefetchScalarGridSpec(
        num_scalar_prefetch=0,
        grid=grid,
        in_specs=[
            pl.BlockSpec(memory_space=pltpu.MemorySpace.SMEM),           # x_scale
            pl.BlockSpec((1, L, cb), lambda b, c: (b, 0, c)),            # x tile
        ],
        out_specs=pl.BlockSpec((1, L, cb), lambda b, c: (b, 0, c)),
    )
    return pl.pallas_call(
        _quantize_act_kernel,
        grid_spec=grid_spec,
        out_shape=jax.ShapeDtypeStruct((B, L, C), jnp.int8),
        compiler_params=pltpu.CompilerParams(
            dimension_semantics=("parallel", "parallel"),
            vmem_limit_bytes=32 * 1024 * 1024,
        ),
    )(x_scale, x_blc)


# ----------------------------------------------------------------------------
# Pass 2: depthwise conv1d on int8 activations + bias + dequant rescale.
# Block layout: activations (1, L, C_blk), weights (K, C_blk), bias (1, C_blk),
# output (1, L_out, C_blk).  The zero halo lives only in VMEM scratch.
# ----------------------------------------------------------------------------
def _conv_kernel(scale_ref, xq_ref, w_ref, b_ref, out_ref, xpad_scr, *,
                 w_scale, kernel_size, padding):
    L = xq_ref.shape[1]
    L_out = out_ref.shape[1]
    C_blk = out_ref.shape[2]
    P = padding

    # Stage this tile into a zero-padded f32 VMEM scratch (no HBM pad copy).
    if P > 0:
        zeros = jnp.zeros((P, C_blk), jnp.float32)
        xpad_scr[pl.ds(0, P), :] = zeros
        xpad_scr[pl.ds(P + L, P), :] = zeros
    xpad_scr[pl.ds(P, L), :] = xq_ref[0].astype(jnp.float32)

    # Depthwise cross-correlation; shift is along the SUBLANE (L) axis.
    w = w_ref[...]                                       # (K, C_blk), loaded once
    acc = w[0:1, :] * xpad_scr[pl.ds(0, L_out), :]       # k = 0 initializes acc
    for k in range(1, kernel_size):                      # tiny static unroll
        acc = acc + w[k:k + 1, :] * xpad_scr[pl.ds(k, L_out), :]

    acc = acc + b_ref[...]                               # (1, C_blk) broadcast
    out_ref[0] = acc * (w_scale * scale_ref[0])          # dequant rescale


def quant_conv1d_blc(x_blc, q_weight_f32, bias, w_scale, *, padding):
    """Channels-last QuantConv1d forward.

    x_blc: (B, L, C) float32, q_weight_f32: (C, K), bias: (C,).
    Returns (B, L_out, C) float32 with L_out = L + 2*padding - (K - 1).
    """
    B, L, C = x_blc.shape
    Cw, K = q_weight_f32.shape
    assert Cw == C
    L_out = L + 2 * padding - (K - 1)  # stride=1, dilation=1, groups=C

    # Global activation scale: trivial XLA reduce; MUST be global (not per-tile).
    x_blc = x_blc.astype(jnp.float32)
    x_scale = (jnp.max(jnp.abs(x_blc)) /
               (2.0 ** 7 - 1.0 + 1e-08)).reshape(1).astype(jnp.float32)

    # Pass 1: materialize int8 activations (4x less conv input traffic).
    x_q = quantize_activation_int8(x_blc, x_scale)

    # Lane-dense parameter slabs.
    w_kc = jnp.transpose(q_weight_f32.astype(jnp.float32), (1, 0))  # (K, C)
    b_1c = bias.reshape(1, C).astype(jnp.float32)                   # (1, C)

    cb = _pick_c_block(C)
    grid = (B, C // cb)
    # TODO(synk): for very long L, add an L grid axis with a K-1 halo
    # (overlapping index_map) instead of holding the full sequence per block.
    kernel = functools.partial(
        _conv_kernel, w_scale=float(w_scale), kernel_size=K, padding=padding)
    grid_spec = pltpu.PrefetchScalarGridSpec(
        num_scalar_prefetch=0,
        grid=grid,
        in_specs=[
            pl.BlockSpec(memory_space=pltpu.MemorySpace.SMEM),       # x_scale
            pl.BlockSpec((1, L, cb), lambda b, c: (b, 0, c)),        # int8 acts
            pl.BlockSpec((K, cb), lambda b, c: (0, c)),              # weights
            pl.BlockSpec((1, cb), lambda b, c: (0, c)),              # bias
        ],
        out_specs=pl.BlockSpec((1, L_out, cb), lambda b, c: (b, 0, c)),
        scratch_shapes=[pltpu.VMEM((L + 2 * padding, cb), jnp.float32)],
    )
    return pl.pallas_call(
        kernel,
        grid_spec=grid_spec,
        out_shape=jax.ShapeDtypeStruct((B, L_out, C), jnp.float32),
        compiler_params=pltpu.CompilerParams(
            dimension_semantics=("parallel", "parallel"),
            vmem_limit_bytes=32 * 1024 * 1024,
        ),
    )(x_scale, x_q, w_kc, b_1c)


def quant_conv1d(x_ncw, q_weight_f32, bias, w_scale, *, padding):
    """PyTorch-layout adapter: (B, C, L) in -> (B, C, L_out) out.

    The transposes are layout plumbing for the NCW interface; real Mamba
    integration should keep activations channels-last and call
    quant_conv1d_blc directly.
    """
    x_blc = jnp.transpose(x_ncw, (0, 2, 1))
    out_blc = quant_conv1d_blc(x_blc, q_weight_f32, bias, w_scale, padding=padding)
    return jnp.transpose(out_blc, (0, 2, 1))


# ----------------------------------------------------------------------------
# Pure-JAX reference mirroring the PyTorch forward (NCW layout).
# ----------------------------------------------------------------------------
def _reference_ncw(x, q_weight_f32, bias, w_scale, *, padding):
    x_scale = jnp.max(jnp.abs(x)) / (2.0 ** 7 - 1.0 + 1e-08)
    x_q = jnp.clip(jnp.round(x / x_scale), -128.0, 127.0)
    x_pad = jnp.pad(x_q, ((0, 0), (0, 0), (padding, padding)))
    K = q_weight_f32.shape[1]
    l_out = x_pad.shape[2] - (K - 1)
    acc = jnp.zeros((x.shape[0], x.shape[1], l_out), jnp.float32)
    for k in range(K):
        acc = acc + q_weight_f32[None, :, k:k + 1] * x_pad[:, :, k:k + l_out]
    acc = acc + bias.reshape(1, -1, 1)
    return acc * (w_scale * x_scale)


if __name__ == "__main__":
    # Mamba-like depthwise conv: C channels (d_inner), kernel_size=4, padding=3.
    B, C, L, K = 2, 256, 64, 4
    padding = K - 1

    key = jax.random.PRNGKey(0)
    k_x, k_w, k_b = jax.random.split(key, 3)

    x = jax.random.normal(k_x, (B, C, L), dtype=jnp.float32)          # NCW input
    float_w = jax.random.normal(k_w, (C, 1, K), dtype=jnp.float32) * 0.1
    bias = jax.random.normal(k_b, (C,), dtype=jnp.float32) * 0.1

    q_w, w_scale, zp = quantize_weight(float_w.reshape(C, K))
    q_w_f32 = q_w.astype(jnp.float32)  # forward uses quantized ints as float (zp NOT removed)

    out = quant_conv1d(x, q_w_f32, bias, w_scale, padding=padding)
    out = jax.block_until_ready(out)

    ref = _reference_ncw(x, q_w_f32, bias, w_scale, padding=padding)
    assert out.shape == (B, C, L + 2 * padding - (K - 1)), out.shape
    assert jnp.allclose(out, ref, atol=1e-4, rtol=1e-4), "mismatch vs reference"

    print("KERNEL_OK")
</pallas_src>

<mosaic_0001>
module attributes {stable_mosaic.version = 11 : i64} {
  func.func @_quantize_act_kernel(%arg0: i32, %arg1: i32, %arg2: memref<1xf32, #tpu.memory_space<smem>>, %arg3: memref<1x64x256xf32, #tpu.memory_space<vmem>>, %arg4: memref<1x64x256xi8, #tpu.memory_space<vmem>>) attributes {dimension_semantics = [#tpu.dimension_semantics<parallel>, #tpu.dimension_semantics<parallel>], iteration_bounds = array<i64: 2, 1>, scalar_prefetch = 0 : i64, scratch_operands = 0 : i64, tpu.core_type = #tpu.core_type<tc>, window_params = [{transform_indices = @transform_0, window_bounds = array<i64: 1>}, {transform_indices = @transform_1, window_bounds = array<i64: 1, 64, 256>}, {transform_indices = @transform_2, window_bounds = array<i64: 1, 64, 256>}]} {
    %c0 = arith.constant 0 : index
    %0 = memref.load %arg2[%c0] : memref<1xf32, #tpu.memory_space<smem>>
    %c0_0 = arith.constant 0 : index
    %c0_1 = arith.constant 0 : index
    %c0_2 = arith.constant 0 : index
    %1 = vector.load %arg3[%c0_0, %c0_1, %c0_2] : memref<1x64x256xf32, #tpu.memory_space<vmem>>, vector<1x64x256xf32>
    %2 = vector.broadcast %0 : f32 to vector<1x64x256xf32>
    %3 = arith.divf %1, %2 : vector<1x64x256xf32>
    %4 = math.roundeven %3 : vector<1x64x256xf32>
    %cst = arith.constant -1.280000e+02 : f32
    %cst_3 = arith.constant 1.270000e+02 : f32
    %5 = vector.broadcast %cst : f32 to vector<1x64x256xf32>
    %6 = arith.maximumf %5, %4 : vector<1x64x256xf32>
    %7 = vector.broadcast %cst_3 : f32 to vector<1x64x256xf32>
    %8 = arith.minimumf %7, %6 : vector<1x64x256xf32>
    %9 = arith.fptosi %8 : vector<1x64x256xf32> to vector<1x64x256xi8>
    %c0_4 = arith.constant 0 : index
    %c0_5 = arith.constant 0 : index
    %c0_6 = arith.constant 0 : index
    %10 = vector.load %arg4[%c0_4, %c0_5, %c0_6] : memref<1x64x256xi8, #tpu.memory_space<vmem>>, vector<1x64x256xi8>
    tpu.vector_store %arg4[%c0_4, %c0_5, %c0_6], %9 {strides = array<i32>} : memref<1x64x256xi8, #tpu.memory_space<vmem>>, vector<1x64x256xi8>,
    return
  }
  func.func @transform_0(%arg0: i32, %arg1: i32) -> i32 {
    %c0_i32 = arith.constant 0 : i32
    %c0_i32_0 = arith.constant 0 : i32
    return %c0_i32 : i32
  }
  func.func @transform_1(%arg0: i32, %arg1: i32) -> (i32, i32, i32) {
    %c0_i32 = arith.constant 0 : i32
    %c0_i32_0 = arith.constant 0 : i32
    return %arg0, %c0_i32, %arg1 : i32, i32, i32
  }
  func.func @transform_2(%arg0: i32, %arg1: i32) -> (i32, i32, i32) {
    %c0_i32 = arith.constant 0 : i32
    %c0_i32_0 = arith.constant 0 : i32
    return %arg0, %c0_i32, %arg1 : i32, i32, i32
  }
}

</mosaic_0001>

<llo_original>
// kernel: tpu_custom_call.1
$region0: #{tpu_custom_call.1}
  #allocation0 [shape = 'u32[]', space=smem, size = 0x4, offset = 0x4, fixed_abs, tag = 'smem constant byte address 0x4 - core index']
  #allocation1 [shape = 'u32[144,128]{1,0:T(1,128)}', space=vmem, size = 0x12000, scoped, tag = 'internal scratch']
  #allocation2 [shape = 'f32[1]{0:T(128)S(6)}', space=smem, size = 0x200, scoped, tag = 'scoped memory for tpu_custom_call.1']
  %s0 = inlined_call_operand.<no memory space> [shape: f32[1], index: 0, kind: input, shape index: {}]
  %s1 = inlined_call_operand.hbm [shape: f32[2,64,256], index: 1, kind: input, shape index: {}]
  %s2 = inlined_call_operand.hbm [shape: s8[2,64,256], index: 2, kind: output, shape index: {}]
  %s3 = sld [smem:[#allocation0]]
  $region45: #{tpu_custom_call.1} parent=0
    _
  %s5 = ssub.s32 1, %s3
  %s6 = scalar_select 0, %s5, %s3
  %7 = sst [smem:[#allocation2]] %s0
  $region1: #{tpu_custom_call.1} parent=0
    #allocation3 [shape = 'u8[131072]{0}', space=vmem, size = 0x20000, scoped, tag = 'input window, operand 1']
    #allocation4 [shape = 's32[2]{0}', space=sflag, size = 0x8, scoped, tag = 'scoped memory for tpu_custom_call.1']
    #allocation5 [shape = 's32[2]{0}', space=sflag, size = 0x8, scoped, tag = 'scoped memory for tpu_custom_call.1']
    #allocation6 [shape = 'u8[32768]{0}', space=vmem, size = 0x8000, scoped, tag = 'output window, operand 0']
    %8 = vsyncpa [#allocation4], 0
    %s9 = scalar_lea.sflag [#allocation4], 1
    %10 = vsyncpa %s9, 0
    %11 = vsyncpa [#allocation5], 0
    %s12 = scalar_lea.sflag [#allocation5], 1
    %13 = vsyncpa %s12, 0
    loop: start=0, step=1, limit=4
    $region2: #{tpu_custom_call.1} parent=1 // loop_pre_header
      _
    $region3: #{tpu_custom_call.1} parent=1 // loop_header
      %s15 = sphi 0, %s19
      %p16 = scmp.ge.s32.totalorder %s15, 4
      %s22 = sphi 0, %s34
      %s23 = sphi 0, %s30
      %s24 = sphi 0, %s22
      %s25 = sphi 0, %s23
      %s26 = sphi 0, %s24
      %s27 = sphi 0, %s25
      %s35 = sphi 0, %s35
      %s37 = sphi 0, %s35
      %s38 = sphi 0, %s37
      %s52 = sphi 0, %s38
      %s60 = sphi 0, %s62
      %s63 = sphi 0, %s60
      %s64 = sphi 0, %s63
      %s80 = sphi 0, %s64
      %s88 = sphi 0, %s90
      %s91 = sphi 0, %s88
      %s92 = sphi 0, %s91
      %s108 = sphi 0, %s92
    $region4: #{tpu_custom_call.1} parent=1 // loop_header_branch
      %18 = sbr.rel (%p16) target = $region8
    $region5: #{tpu_custom_call.1} parent=1 // loop_body
      %s20 = ssub.s32 %s15, 1
      %s21 = ssub.s32 %s15, 2
      %s28 = sadd.s32 1, %s23
      %p29 = scmp.ge.s32.totalorder %s28, 1
      %s30 = scalar_select %p29, 0, %s28
      %s31 = sadd.s32 1, %s22
      %s32 = scalar_select %p29, %s31, %s22
      %p33 = scmp.ge.s32.totalorder %s32, 2
      %s34 = scalar_select %p33, 0, %s32
      %s36 = sadd.s32 %s35, 1
      %p39 = scmp.eq.s32.totalorder %s15, 1
      %p40 = scmp.ne.s32.totalorder %s35, %s37
      %p41 = scmp.eq.s32.totalorder %s15, 0
      %p42 = por %p40, %p41
      %p43 = scmp.ne.s32.totalorder %s35, %s37
      %p44 = scmp.eq.s32.totalorder %s20, 1
      %p45 = por %p43, %p44
      %p46 = scmp.ne.s32.totalorder %s37, %s38
      %p47 = scmp.eq.s32.totalorder %s20, 0
      %p48 = por %p46, %p47
      %p49 = scmp.ne.s32.totalorder %s37, %s38
      %p50 = scmp.eq.s32.totalorder %s21, 1
      %p51 = por %p49, %p50
      %p53 = scmp.ne.s32.totalorder %s38, %s52
      %p54 = scmp.eq.s32.totalorder %s21, 0
      %p55 = por %p53, %p54
      %s56 = ssub.s32 %s22, %s34
      %s57 = ssub.s32 %s23, %s30
      %s58 = sor.u32 %s56, %s57
      %p59 = scmp.eq.s32.totalorder %s58, 0
      %s61 = sadd.s32 %s60, 1
      %s62 = scalar_select %p59, %s60, %s61
      %p65 = pneg %p59
      %p66 = scmp.eq.s32.totalorder %s15, 1
      %p67 = por %p65, %p66
      %p68 = scmp.ne.s32.totalorder %s60, %s63
      %p69 = scmp.eq.s32.totalorder %s15, 0
      %p70 = por %p68, %p69
      %p71 = scmp.ne.s32.totalorder %s60, %s63
      %p72 = scmp.eq.s32.totalorder %s20, 1
      %p73 = por %p71, %p72
      %p74 = scmp.ne.s32.totalorder %s63, %s64
      %p75 = scmp.eq.s32.totalorder %s20, 0
      %p76 = por %p74, %p75
      %p77 = scmp.ne.s32.totalorder %s63, %s64
      %p78 = scmp.eq.s32.totalorder %s21, 1
      %p79 = por %p77, %p78
      %p81 = scmp.ne.s32.totalorder %s64, %s80
      %p82 = scmp.eq.s32.totalorder %s21, 0
      %p83 = por %p81, %p82
      %s84 = ssub.s32 %s22, %s34
      %s85 = ssub.s32 %s23, %s30
      %s86 = sor.u32 %s84, %s85
      %p87 = scmp.eq.s32.totalorder %s86, 0
      %s89 = sadd.s32 %s88, 1
      %s90 = scalar_select %p87, %s88, %s89
      %p93 = pneg %p87
      %p94 = scmp.eq.s32.totalorder %s15, 1
      %p95 = por %p93, %p94
      %p96 = scmp.ne.s32.totalorder %s88, %s91
      %p97 = scmp.eq.s32.totalorder %s15, 0
      %p98 = por %p96, %p97
      %p99 = scmp.ne.s32.totalorder %s88, %s91
      %p100 = scmp.eq.s32.totalorder %s20, 1
      %p101 = por %p99, %p100
      %p102 = scmp.ne.s32.totalorder %s91, %s92
      %p103 = scmp.eq.s32.totalorder %s20, 0
      %p104 = por %p102, %p103
      %p105 = scmp.ne.s32.totalorder %s91, %s92
      %p106 = scmp.eq.s32.totalorder %s21, 1
      %p107 = por %p105, %p106
      %p109 = scmp.ne.s32.totalorder %s92, %s108
      %p110 = scmp.eq.s32.totalorder %s21, 0
      %p111 = por %p109, %p110
      %p112 = scmp.le.s32.totalorder 1, %s15
      %p113 = scmp.lt.s32.totalorder %s15, 3
      %p114 = pnand %p112, %p113
      %p115 = pneg %p114
      // Predicated region
      $region9: #{tpu_custom_call.1} parent=5 // pred_check
        _
      $region10: #{tpu_custom_call.1} parent=5 // pred_check_branch
        %117 = sbr.rel (%p114) target = $region12
      $region11: #{tpu_custom_call.1} parent=5 // pred_region
        %s118 = ssub.s32 %s15, 1
        // Predicated region
        $region13: #{tpu_custom_call.1} parent=11 // pred_check
          %p119 = pneg %p48
        $region14: #{tpu_custom_call.1} parent=11 // pred_check_branch
          %121 = sbr.rel (%p119) target = $region16
        $region15: #{tpu_custom_call.1} parent=11 // pred_region
          _
        $region16: #{tpu_custom_call.1} parent=11 // pred_fallthru
          _
      $region12: #{tpu_custom_call.1} parent=5 // pred_fallthru
        _
      %p122 = scmp.lt.s32.totalorder %s15, 2
      // Predicated region
      $region17: #{tpu_custom_call.1} parent=5 // pred_check
        %p123 = pneg %p122
      $region18: #{tpu_custom_call.1} parent=5 // pred_check_branch
        %125 = sbr.rel (%p123) target = $region20
      $region19: #{tpu_custom_call.1} parent=5 // pred_region
        // Predicated region
        $region21: #{tpu_custom_call.1} parent=19 // pred_check
          %p126 = pneg %p70
        $region22: #{tpu_custom_call.1} parent=19 // pred_check_branch
          %128 = sbr.rel (%p126) target = $region24
        $region23: #{tpu_custom_call.1} parent=19 // pred_region
          %s129 = sand.u32 %s60, 1
          %s130 = scalar_lea.sflag [#allocation4], %s129
          %s131 = sand.u32 %s60, 1
          %s132 = smul.addr %s131, 128
          %s133 = scalar_lea.vmem [#allocation3], %s132
          %s134 = smul.u32 2, %s23
          %s136 = ssub.s32 2048, 2048
          %137 = vsyncadd %s130, %s136
          %s138 = smul.addr %s22, 16
          %s139 = sadd.s32 %s134, %s138
          %s140 = smul.addr %s139, 128
          %s141 = scalar_lea.hbm %s1, %s140
          %s142 = sshll.u32 %s133, 4
          %s143 = int_to_ptr.vmem [resolvable:$true] %s142
          %148 = dma.hbm_to_vmem [thread:$0]  %s141, 2048, %s143, %s130, 256, 256, 16
        $region24: #{tpu_custom_call.1} parent=19 // pred_fallthru
          _
      $region20: #{tpu_custom_call.1} parent=5 // pred_fallthru
        _
      %p149 = scmp.le.s32.totalorder 1, %s15
      %p150 = scmp.lt.s32.totalorder %s15, 3
      %p151 = pnand %p149, %p150
      %p152 = pneg %p151
      // Predicated region
      $region25: #{tpu_custom_call.1} parent=5 // pred_check
        _
      $region26: #{tpu_custom_call.1} parent=5 // pred_check_branch
        %154 = sbr.rel (%p151) target = $region28
      $region27: #{tpu_custom_call.1} parent=5 // pred_region
        %s155 = ssub.s32 %s15, 1
        %s156 = sand.u32 %s63, 1
        %s157 = scalar_lea.sflag [#allocation4], %s156
        %s158 = sand.u32 %s63, 1
        %s159 = smul.addr %s158, 128
        %s160 = scalar_lea.vmem [#allocation3], %s159
        // Predicated region
        $region29: #{tpu_custom_call.1} parent=27 // pred_check
          %p161 = pneg %p76
        $region30: #{tpu_custom_call.1} parent=27 // pred_check_branch
          %163 = sbr.rel (%p161) target = $region32
        $region31: #{tpu_custom_call.1} parent=27 // pred_region
          %164 = dma.done %s157, 2048
        $region32: #{tpu_custom_call.1} parent=27 // pred_fallthru
          _
        %p165 = pneg %p48
        %p166 = pneg %p45
        %s167 = sand.u32 %s63, 1
        %s168 = scalar_lea.sflag [#allocation4], %s167
        %s169 = sand.u32 %s63, 1
        %s170 = smul.addr %s169, 128
        %s171 = scalar_lea.vmem [#allocation3], %s170
        %p172 = pneg %p76
        %p173 = pneg %p73
        %p174 = pneg %p104
        %p175 = pneg %p101
        %s176 = sand.u32 %s91, 1
        %s177 = scalar_lea.sflag [#allocation5], %s176
        %s178 = sand.u32 %s91, 1
        %s179 = smul.addr %s178, 32
        %s180 = scalar_lea.vmem [#allocation6], %s179
        %s181 = smul.u32 2, %s25
        %s182 = smul.u32 2, %s25
        %s183 = sld [smem:[#allocation2]]
        %v184 = vld [vmem:[%s160] sm:$0xff]
        %v185 = vld [vmem:[%s160 + $0x8] sm:$0xff]
        %v186 = vld [vmem:[%s160 + $0x10] sm:$0xff]
        %v187 = vld [vmem:[%s160 + $0x18] sm:$0xff]
        %v188 = vld [vmem:[%s160 + $0x20] sm:$0xff]
        %v189 = vld [vmem:[%s160 + $0x28] sm:$0xff]
        %v190 = vld [vmem:[%s160 + $0x30] sm:$0xff]
        %v191 = vld [vmem:[%s160 + $0x38] sm:$0xff]
        %v192 = vld [vmem:[%s160 + $0x40] sm:$0xff]
        %v193 = vld [vmem:[%s160 + $0x48] sm:$0xff]
        %v194 = vld [vmem:[%s160 + $0x50] sm:$0xff]
        %v195 = vld [vmem:[%s160 + $0x58] sm:$0xff]
        %v196 = vld [vmem:[%s160 + $0x60] sm:$0xff]
        %v197 = vld [vmem:[%s160 + $0x68] sm:$0xff]
        %v198 = vld [vmem:[%s160 + $0x70] sm:$0xff]
        %v199 = vld [vmem:[%s160 + $0x78] sm:$0xff]
        %v200 = vstv %s183
        %v201 = vrcp.pop %v200
        %v202 = vmul.f32 %v184, %v201
        %v203 = vmul.f32 %v185, %v201
        %v204 = vmul.f32 %v186, %v201
        %v205 = vmul.f32 %v187, %v201
        %v206 = vmul.f32 %v188, %v201
        %v207 = vmul.f32 %v189, %v201
        %v208 = vmul.f32 %v190, %v201
        %v209 = vmul.f32 %v191, %v201
        %v210 = vmul.f32 %v192, %v201
        %v211 = vmul.f32 %v193, %v201
        %v212 = vmul.f32 %v194, %v201
        %v213 = vmul.f32 %v195, %v201
        %v214 = vmul.f32 %v196, %v201
        %v215 = vmul.f32 %v197, %v201
        %v216 = vmul.f32 %v198, %v201
        %v217 = vmul.f32 %v199, %v201
        %v218 = vround.ne.pseudo %v202
        %v219 = vround.ne.pseudo %v203
        %v220 = vround.ne.pseudo %v204
        %v221 = vround.ne.pseudo %v205
        %v222 = vround.ne.pseudo %v206
        %v223 = vround.ne.pseudo %v207
        %v224 = vround.ne.pseudo %v208
        %v225 = vround.ne.pseudo %v209
        %v226 = vround.ne.pseudo %v210
        %v227 = vround.ne.pseudo %v211
        %v228 = vround.ne.pseudo %v212
        %v229 = vround.ne.pseudo %v213
        %v230 = vround.ne.pseudo %v214
        %v231 = vround.ne.pseudo %v215
        %v232 = vround.ne.pseudo %v216
        %v233 = vround.ne.pseudo %v217
        %v234 = vmax.f32 %v218, -128.0
        %v235 = vmax.f32 %v219, -128.0
        %v236 = vmax.f32 %v220, -128.0
        %v237 = vmax.f32 %v221, -128.0
        %v238 = vmax.f32 %v222, -128.0
        %v239 = vmax.f32 %v223, -128.0
        %v240 = vmax.f32 %v224, -128.0
        %v241 = vmax.f32 %v225, -128.0
        %v242 = vmax.f32 %v226, -128.0
        %v243 = vmax.f32 %v227, -128.0
        %v244 = vmax.f32 %v228, -128.0
        %v245 = vmax.f32 %v229, -128.0
        %v246 = vmax.f32 %v230, -128.0
        %v247 = vmax.f32 %v231, -128.0
        %v248 = vmax.f32 %v232, -128.0
        %v249 = vmax.f32 %v233, -128.0
        %v250 = vmin.f32 %v234, 127.0
        %v251 = vmin.f32 %v235, 127.0
        %v252 = vmin.f32 %v236, 127.0
        %v253 = vmin.f32 %v237, 127.0
        %v254 = vmin.f32 %v238, 127.0
        %v255 = vmin.f32 %v239, 127.0
        %v256 = vmin.f32 %v240, 127.0
        %v257 = vmin.f32 %v241, 127.0
        %v258 = vmin.f32 %v242, 127.0
        %v259 = vmin.f32 %v243, 127.0
        %v260 = vmin.f32 %v244, 127.0
        %v261 = vmin.f32 %v245, 127.0
        %v262 = vmin.f32 %v246, 127.0
        %v263 = vmin.f32 %v247, 127.0
        %v264 = vmin.f32 %v248, 127.0
        %v265 = vmin.f32 %v249, 127.0
        %v266 = vmax.f32 %v250, -128.0
        %v267 = vmax.f32 %v251, -128.0
        %v268 = vmax.f32 %v252, -128.0
        %v269 = vmax.f32 %v253, -128.0
        %v270 = vmax.f32 %v254, -128.0
        %v271 = vmax.f32 %v255, -128.0
        %v272 = vmax.f32 %v256, -128.0
        %v273 = vmax.f32 %v257, -128.0
        %v274 = vmax.f32 %v258, -128.0
        %v275 = vmax.f32 %v259, -128.0
        %v276 = vmax.f32 %v260, -128.0
        %v277 = vmax.f32 %v261, -128.0
        %v278 = vmax.f32 %v262, -128.0
        %v279 = vmax.f32 %v263, -128.0
        %v280 = vmax.f32 %v264, -128.0
        %v281 = vmax.f32 %v265, -128.0
        %v282 = vmin.f32 %v266, 127.0
        %v283 = vmin.f32 %v267, 127.0
        %v284 = vmin.f32 %v268, 127.0
        %v285 = vmin.f32 %v269, 127.0
        %v286 = vmin.f32 %v270, 127.0
        %v287 = vmin.f32 %v271, 127.0
        %v288 = vmin.f32 %v272, 127.0
        %v289 = vmin.f32 %v273, 127.0
        %v290 = vmin.f32 %v274, 127.0
        %v291 = vmin.f32 %v275, 127.0
        %v292 = vmin.f32 %v276, 127.0
        %v293 = vmin.f32 %v277, 127.0
        %v294 = vmin.f32 %v278, 127.0
        %v295 = vmin.f32 %v279, 127.0
        %v296 = vmin.f32 %v280, 127.0
        %v297 = vmin.f32 %v281, 127.0
        %v298 = vcvt.f32.s32.to.zero.pseudo %v282
        %v299 = vcvt.f32.s32.to.zero.pseudo %v283
        %v300 = vcvt.f32.s32.to.zero.pseudo %v284
        %v301 = vcvt.f32.s32.to.zero.pseudo %v285
        %v302 = vcvt.f32.s32.to.zero.pseudo %v286
        %v303 = vcvt.f32.s32.to.zero.pseudo %v287
        %v304 = vcvt.f32.s32.to.zero.pseudo %v288
        %v305 = vcvt.f32.s32.to.zero.pseudo %v289
        %v306 = vcvt.f32.s32.to.zero.pseudo %v290
        %v307 = vcvt.f32.s32.to.zero.pseudo %v291
        %v308 = vcvt.f32.s32.to.zero.pseudo %v292
        %v309 = vcvt.f32.s32.to.zero.pseudo %v293
        %v310 = vcvt.f32.s32.to.zero.pseudo %v294
        %v311 = vcvt.f32.s32.to.zero.pseudo %v295
        %v312 = vcvt.f32.s32.to.zero.pseudo %v296
        %v313 = vcvt.f32.s32.to.zero.pseudo %v297
        %v314 = vpack.c.b16 %v300, %v298
        %v315 = vpack.c.b16 %v304, %v302
        %v316 = vpack.c.b8 %v315, %v314
        %v317 = vpack.c.b16 %v301, %v299
        %v318 = vpack.c.b16 %v305, %v303
        %v319 = vpack.c.b8 %v318, %v317
        %v320 = vpack.c.b16 %v308, %v306
        %v321 = vpack.c.b16 %v312, %v310
        %v322 = vpack.c.b8 %v321, %v320
        %v323 = vpack.c.b16 %v309, %v307
        %v324 = vpack.c.b16 %v313, %v311
        %v325 = vpack.c.b8 %v324, %v323
        %326 = vst [vmem:[%s180] sm:$0xff] %v316
        %327 = vst [vmem:[%s180 + $0x8] sm:$0xff] %v319
        %328 = vst [vmem:[%s180 + $0x10] sm:$0xff] %v322
        %329 = vst [vmem:[%s180 + $0x18] sm:$0xff] %v325
        %s330 = sand.u32 %s91, 1
        %s331 = scalar_lea.sflag [#allocation5], %s330
        %s332 = sand.u32 %s91, 1
        %s333 = smul.addr %s332, 32
        %s334 = scalar_lea.vmem [#allocation6], %s333
        // Predicated region
        $region33: #{tpu_custom_call.1} parent=27 // pred_check
          %p335 = pneg %p101
        $region34: #{tpu_custom_call.1} parent=27 // pred_check_branch
          %337 = sbr.rel (%p335) target = $region36
        $region35: #{tpu_custom_call.1} parent=27 // pred_region
          %s338 = smul.u32 2, %s25
          %s340 = ssub.s32 512, 512
          %341 = vsyncadd %s331, %s340
          %s342 = smul.addr %s24, 4
          %s343 = sadd.s32 %s338, %s342
          %s344 = smul.addr %s343, 128
          %s345 = scalar_lea.hbm %s2, %s344
          %s346 = sshll.u32 %s334, 4
          %s347 = int_to_ptr.vmem [resolvable:$true] %s346
          %352 = dma.vmem_to_hbm [thread:$0]  %s347, 512, %s345, %s331, 256, 256, 16
        $region36: #{tpu_custom_call.1} parent=27 // pred_fallthru
          _
      $region28: #{tpu_custom_call.1} parent=5 // pred_fallthru
        _
      %p353 = scmp.le.s32.totalorder 2, %s15
      // Predicated region
      $region37: #{tpu_custom_call.1} parent=5 // pred_check
        %p354 = pneg %p353
      $region38: #{tpu_custom_call.1} parent=5 // pred_check_branch
        %356 = sbr.rel (%p354) target = $region40
      $region39: #{tpu_custom_call.1} parent=5 // pred_region
        %s357 = ssub.s32 %s15, 2
        // Predicated region
        $region41: #{tpu_custom_call.1} parent=39 // pred_check
          %p358 = pneg %p107
        $region42: #{tpu_custom_call.1} parent=39 // pred_check_branch
          %360 = sbr.rel (%p358) target = $region44
        $region43: #{tpu_custom_call.1} parent=39 // pred_region
          %s361 = sand.u32 %s92, 1
          %s362 = scalar_lea.sflag [#allocation5], %s361
          %s363 = sand.u32 %s92, 1
          %s364 = smul.addr %s363, 32
          %s365 = scalar_lea.vmem [#allocation6], %s364
          %366 = dma.done %s362, 512
        $region44: #{tpu_custom_call.1} parent=39 // pred_fallthru
          _
      $region40: #{tpu_custom_call.1} parent=5 // pred_fallthru
        _
    $region6: #{tpu_custom_call.1} parent=1 // loop_footer
      %s19 = sadd.s32 1, %s15
    $region7: #{tpu_custom_call.1} parent=1 // loop_footer_branch
      %14 = sbr.rel target = $region3
    $region8: #{tpu_custom_call.1} parent=1 // loop_exit
      _
    %367 = vsyncpa [#allocation4], 1
    %s368 = scalar_lea.sflag [#allocation4], 1
    %369 = vsyncpa %s368, 1
    %370 = vsyncpa [#allocation5], 1
    %s371 = scalar_lea.sflag [#allocation5], 1
    %372 = vsyncpa %s371, 1

</llo_original>
